<compile_context>
chip_gen: v7x
topology: tpu7x:2x2x1
jax: 0.10.0
libtpu: 0.0.40
codegen_flags: <defaults>
</compile_context>

<pallas_src>
import jax
import jax.numpy as jnp
from jax.experimental import pallas as pl
from jax.experimental.pallas import tpu as pltpu


def _affine_scale_kernel(coef_ref, x_ref, o_ref):
    # coef_ref: (rt, 1) f32; x_ref / o_ref: (rt, tt).
    # (rt, 1) broadcasts along lanes for free on the VPU; multiply is promoted
    # to f32 and cast once on the store.
    o_ref[...] = (x_ref[...] * coef_ref[...]).astype(o_ref.dtype)


def _round_up(v, m):
    return ((v + m - 1) // m) * m


def _round_down(v, m):
    return (v // m) * m


def _vmem_capacity_bytes():
    # Per-generation VMEM (v5e/v6e: 128 MiB, v7x: 64 MiB). Fall back to the
    # most conservative value if the query is unavailable.
    try:
        return int(pltpu.get_tpu_info().vmem_capacity_bytes)
    except Exception:
        return 64 * 2**20


def _select_tiles(R, T, itemsize):
    """Pick (rt, tt) for an (R, T) elementwise stream.

    Budget-driven: in + out, double-buffered => 4x the block, kept under ~half
    of the physical VMEM of the current TPU generation.
    """
    pack = max(1, 4 // itemsize)        # sublane packing: f32->1, bf16->2, int8->4
    r_align = 8 * pack                  # dtype-aware sublane alignment
    lane = 128

    cap = _vmem_capacity_bytes()
    block_budget = cap // 8             # 4x block (in+out, 2-deep) <= cap/2

    t_pad_full = _round_up(T, lane)

    # Prefer whole rows (one contiguous slab per DMA, 1-D grid).
    if T <= lane or r_align * t_pad_full * itemsize * 4 <= block_budget:
        tt = T
        tt_pad = t_pad_full
    else:
        # Extremely long T: largest 128-multiple that still fits with minimal rows.
        tt = max(lane, _round_down(block_budget // (r_align * itemsize * 4), lane))
        tt = min(tt, t_pad_full)
        tt_pad = tt

    # Row tile: largest aligned count within budget, capped near the measured
    # sweet spot (~1024 rows) and at the (padded) problem size.
    rt_budget = block_budget // max(1, tt_pad * itemsize * 4)
    rt = max(r_align, _round_down(rt_budget, r_align))
    rt = min(rt, 1024, _round_up(R, r_align))

    # v7x megacore: keep >= 2 row blocks when there is enough work to split.
    if R > r_align and pl.cdiv(R, rt) < 2:
        rt = max(r_align, _round_up(pl.cdiv(R, 2), r_align))

    return rt, tt, r_align


def _drop_path_coef(batch, drop_prob, training, key):
    """Per-sample stochastic-depth multiplier (float32): 1/keep_prob or 0."""
    if drop_prob == 0.0 or not training:
        return jnp.ones((batch,), jnp.float32)
    if key is None:
        raise ValueError("key is required for training-mode drop path")
    keep_prob = 1.0 - drop_prob
    u = jax.random.uniform(key, (batch,), jnp.float32)
    mask = jnp.floor(keep_prob + u)      # 0/1, same floor trick as torch
    return mask / keep_prob
# TODO(synk): the keep mask could be sampled in-kernel via pltpu.prng_*; it is
# kept in the wrapper so the per-sample semantics stay explicit and testable.


def affine_drop_path_pallas(x, scale, *, drop_prob=0.0, training=False, key=None):
    """x: (B, C, T); scale: (1, C, 1) or (C,). Returns drop_path(scale * x)."""
    B, C, T = x.shape
    dt = x.dtype
    itemsize = jnp.dtype(dt).itemsize

    # Fold per-sample mask and per-channel scale into one (B*C, 1) f32 column
    # (f32 so bf16/fp8 inputs don't skew the keep probability / tiny scale).
    scale32 = jnp.reshape(scale, (C,)).astype(jnp.float32)
    samp = _drop_path_coef(B, drop_prob, training, key)               # (B,) f32
    coef = (samp[:, None] * scale32[None, :]).reshape(B * C, 1)       # (B*C, 1) f32

    R = B * C
    x2 = x.reshape(R, T)

    rt, tt, r_align = _select_tiles(R, T, itemsize)

    # VMEM footprint: x & out blocks (double-buffered) + coef column; limit is
    # ~1.5x that, never close to the physical capacity (headroom for Mosaic).
    cap = _vmem_capacity_bytes()
    rt_pad = _round_up(rt, r_align)
    blk_bytes = rt_pad * _round_up(min(tt, T), 128) * itemsize
    coef_bytes = rt_pad * 128 * 4
    need = 4 * blk_bytes + 2 * coef_bytes + (1 << 20)
    vmem_limit = int(max(4 * 2**20, min(int(1.5 * need), (cap * 3) // 4)))

    if tt >= T:
        # 1-D grid over row blocks; each block is one contiguous rt*T slab.
        grid = (pl.cdiv(R, rt),)
        coef_spec = pl.BlockSpec((rt, 1), lambda r: (r, 0))
        x_spec = pl.BlockSpec((rt, T), lambda r: (r, 0))
        out_spec = pl.BlockSpec((rt, T), lambda r: (r, 0))
        dims = ("parallel",)
    else:
        # Fallback for extremely long T. Keep the time axis INNERMOST so the
        # (rt, 1) coef block index is constant across it and stays resident.
        grid = (pl.cdiv(R, rt), pl.cdiv(T, tt))
        coef_spec = pl.BlockSpec((rt, 1), lambda r, t: (r, 0))
        x_spec = pl.BlockSpec((rt, tt), lambda r, t: (r, t))
        out_spec = pl.BlockSpec((rt, tt), lambda r, t: (r, t))
        dims = ("parallel", "parallel")

    out2 = pl.pallas_call(
        _affine_scale_kernel,
        out_shape=jax.ShapeDtypeStruct((R, T), dt),
        grid=grid,
        in_specs=[coef_spec, x_spec],
        out_specs=out_spec,
        input_output_aliases={1: 0},     # x may be reused for the output buffer
        compiler_params=pltpu.CompilerParams(
            dimension_semantics=dims,
            vmem_limit_bytes=vmem_limit,
        ),
    )(coef, x2)
    return out2.reshape(B, C, T)


# ---------------- pure-JAX reference (mirrors the PyTorch forward) ----------------
def affine_drop_path_ref(x, scale, *, drop_prob=0.0, training=False, key=None):
    B, C, T = x.shape
    samp = _drop_path_coef(B, drop_prob, training, key)               # f32
    coef = samp[:, None] * jnp.reshape(scale, (C,)).astype(jnp.float32)[None, :]
    return (x * coef[:, :, None]).astype(x.dtype)


if __name__ == "__main__":
    B, C, T = 2, 4, 16                     # x: (batch, num_dim, time)
    root = jax.random.PRNGKey(0)
    kx, ks, kd = jax.random.split(root, 3)

    x = jax.random.normal(kx, (B, C, T), jnp.float32)
    # module inits scale = 1e-4 * ones((1, C, 1)); perturb per-channel so the
    # numerical check is non-trivial (the parameter is learnable anyway).
    scale = 1e-4 * (1.0 + jax.random.uniform(ks, (1, C, 1), jnp.float32))

    # eval mode: drop_path is the identity, y = scale * x
    out = affine_drop_path_pallas(x, scale)
    out = jax.block_until_ready(out)
    ref = affine_drop_path_ref(x, scale)
    err = float(jnp.max(jnp.abs(out - ref)))
    assert out.shape == (B, C, T)
    assert jnp.allclose(out, ref, atol=1e-6, rtol=1e-6), err

    # training mode with stochastic depth (same JAX-sampled mask in kernel & ref)
    out_tr = affine_drop_path_pallas(x, scale, drop_prob=0.3, training=True, key=kd)
    out_tr = jax.block_until_ready(out_tr)
    ref_tr = affine_drop_path_ref(x, scale, drop_prob=0.3, training=True, key=kd)
    err_tr = float(jnp.max(jnp.abs(out_tr - ref_tr)))
    assert jnp.allclose(out_tr, ref_tr, atol=1e-6, rtol=1e-6), err_tr

    # an odd / non-factorable shape exercises the cdiv (ragged-block) path
    x3 = jax.random.normal(kx, (3, 5, 19), jnp.float32)
    s3 = 1e-4 * jnp.ones((1, 5, 1), jnp.float32)
    out3 = jax.block_until_ready(affine_drop_path_pallas(x3, s3))
    assert jnp.allclose(out3, affine_drop_path_ref(x3, s3), atol=1e-6, rtol=1e-6)

    print("KERNEL_OK")
</pallas_src>

<mosaic_0001>
module attributes {stable_mosaic.version = 11 : i64} {
  func.func @_affine_scale_kernel(%arg0: i32, %arg1: memref<8x1xf32, #tpu.memory_space<vmem>>, %arg2: memref<8x16xf32, #tpu.memory_space<vmem>>, %arg3: memref<8x16xf32, #tpu.memory_space<vmem>>) attributes {dimension_semantics = [#tpu.dimension_semantics<parallel>], iteration_bounds = array<i64: 1>, scalar_prefetch = 0 : i64, scratch_operands = 0 : i64, tpu.core_type = #tpu.core_type<tc>, window_params = [{transform_indices = @transform_0, window_bounds = array<i64: 8, 1>}, {transform_indices = @transform_1, window_bounds = array<i64: 8, 16>}, {transform_indices = @transform_2, window_bounds = array<i64: 8, 16>}]} {
    %c0 = arith.constant 0 : index
    %c0_0 = arith.constant 0 : index
    %0 = vector.load %arg2[%c0, %c0_0] : memref<8x16xf32, #tpu.memory_space<vmem>>, vector<8x16xf32>
    %c0_1 = arith.constant 0 : index
    %c0_2 = arith.constant 0 : index
    %1 = vector.load %arg1[%c0_1, %c0_2] : memref<8x1xf32, #tpu.memory_space<vmem>>, vector<8x1xf32>
    %2 = vector.broadcast %1 : vector<8x1xf32> to vector<8x16xf32>
    %3 = arith.mulf %0, %2 : vector<8x16xf32>
    %c0_3 = arith.constant 0 : index
    %c0_4 = arith.constant 0 : index
    %4 = vector.load %arg3[%c0_3, %c0_4] : memref<8x16xf32, #tpu.memory_space<vmem>>, vector<8x16xf32>
    tpu.vector_store %arg3[%c0_3, %c0_4], %3 {strides = array<i32>} : memref<8x16xf32, #tpu.memory_space<vmem>>, vector<8x16xf32>,
    return
  }
  func.func @transform_0(%arg0: i32) -> (i32, i32) {
    %c0_i32 = arith.constant 0 : i32
    %c0_i32_0 = arith.constant 0 : i32
    return %arg0, %c0_i32 : i32, i32
  }
  func.func @transform_1(%arg0: i32) -> (i32, i32) {
    %c0_i32 = arith.constant 0 : i32
    %c0_i32_0 = arith.constant 0 : i32
    return %arg0, %c0_i32 : i32, i32
  }
  func.func @transform_2(%arg0: i32) -> (i32, i32) {
    %c0_i32 = arith.constant 0 : i32
    %c0_i32_0 = arith.constant 0 : i32
    return %arg0, %c0_i32 : i32, i32
  }
}

</mosaic_0001>

<llo_original>
// kernel: tpu_custom_call.1
$region0: #{tpu_custom_call.1}
  #allocation0 [shape = 'u32[]', space=smem, size = 0x4, offset = 0x4, fixed_abs, tag = 'smem constant byte address 0x4 - core index']
  #allocation1 [shape = 'u32[144,128]{1,0:T(1,128)}', space=vmem, size = 0x12000, scoped, tag = 'internal scratch']
  %s0 = inlined_call_operand.vmem [shape: f32[8,1], index: 0, kind: input, shape index: {}]
  %s1 = inlined_call_operand.hbm [shape: f32[8,16], index: 1, kind: input, shape index: {}, may-alias: {1,2}]
  %s2 = inlined_call_operand.hbm [shape: f32[8,16], index: 2, kind: output, shape index: {}, may-alias: {1,2}]
  %s3 = sld [smem:[#allocation0]]
  $region22: #{tpu_custom_call.1} parent=0
    _
  %s5 = ssub.s32 1, %s3
  %s6 = scalar_select 0, %s5, %s3
  $region1: #{tpu_custom_call.1} parent=0
    #allocation2 [shape = 'u8[4096]{0}', space=vmem, size = 0x1000, scoped, tag = 'input window, operand 1, single buffered']
    #allocation3 [shape = 's32[1]{0}', space=sflag, size = 0x4, scoped, tag = 'scoped memory for tpu_custom_call.1']
    #allocation4 [shape = 's32[1]{0}', space=sflag, size = 0x4, scoped, tag = 'scoped memory for tpu_custom_call.1']
    #allocation5 [shape = 'u8[4096]{0}', space=vmem, size = 0x1000, scoped, tag = 'output window, operand 0, single buffered']
    %7 = vsyncpa [#allocation3], 0
    %8 = vsyncpa [#allocation4], 0
    // Predicated region
    $region2: #{tpu_custom_call.1} parent=1 // pred_check
      _
    $region3: #{tpu_custom_call.1} parent=1 // pred_check_branch
      %10 = sbr.rel (0) target = $region5
    $region4: #{tpu_custom_call.1} parent=1 // pred_region
      _
    $region5: #{tpu_custom_call.1} parent=1 // pred_fallthru
      _
    // Predicated region
    $region6: #{tpu_custom_call.1} parent=1 // pred_check
      _
    $region7: #{tpu_custom_call.1} parent=1 // pred_check_branch
      %12 = sbr.rel (0) target = $region9
    $region8: #{tpu_custom_call.1} parent=1 // pred_region
      %s14 = ssub.s32 128, 128
      %15 = vsyncadd [#allocation3], %s14
      %s17 = sshll.u32 [#allocation2], 4
      %s18 = int_to_ptr.vmem [resolvable:$true] %s17
      %20 = dma.hbm_to_vmem [thread:$0]  %s1, 128, %s18, [#allocation3]
    $region9: #{tpu_custom_call.1} parent=1 // pred_fallthru
      _
    // Predicated region
    $region10: #{tpu_custom_call.1} parent=1 // pred_check
      _
    $region11: #{tpu_custom_call.1} parent=1 // pred_check_branch
      %22 = sbr.rel (0) target = $region13
    $region12: #{tpu_custom_call.1} parent=1 // pred_region
      %23 = dma.done [#allocation3], 128
    $region13: #{tpu_custom_call.1} parent=1 // pred_fallthru
      _
    %v24 = vld [vmem:[#allocation2] sm:$0xff]
    %v25 = vld [vmem:[%s0] sm:$0xff]
    %27 = vset.pattern.permute.xlu0 0
    %28 = vperm.xlu0 %27, %v25
    %v29 = vpop.permute.xlu0 %28
    %v31 = vmul.f32 %v24, %v29
    %vm32 = vcmask 130048
    %33 = vst.msk [vmem:[#allocation5] sm:$0xff] %vm32, %v31
    // Predicated region
    $region14: #{tpu_custom_call.1} parent=1 // pred_check
      _
    $region15: #{tpu_custom_call.1} parent=1 // pred_check_branch
      %35 = sbr.rel (0) target = $region17
    $region16: #{tpu_custom_call.1} parent=1 // pred_region
      %s37 = ssub.s32 128, 128
      %38 = vsyncadd [#allocation4], %s37
      %s40 = sshll.u32 [#allocation5], 4
      %s41 = int_to_ptr.vmem [resolvable:$true] %s40
      %43 = dma.vmem_to_hbm [thread:$0]  %s41, 128, %s2, [#allocation4]
    $region17: #{tpu_custom_call.1} parent=1 // pred_fallthru
      _
    // Predicated region
    $region18: #{tpu_custom_call.1} parent=1 // pred_check
      _
    $region19: #{tpu_custom_call.1} parent=1 // pred_check_branch
      %45 = sbr.rel (0) target = $region21
    $region20: #{tpu_custom_call.1} parent=1 // pred_region
      %46 = dma.done [#allocation4], 128
    $region21: #{tpu_custom_call.1} parent=1 // pred_fallthru
      _
    %47 = vsyncpa [#allocation3], 1
    %48 = vsyncpa [#allocation4], 1

</llo_original>
